<compile_context>
chip_gen: v5e
topology: v5e:2x2
jax: 0.10.0
libtpu: 0.0.40
codegen_flags: <defaults>
</compile_context>

<pallas_src>
import functools

import jax
import jax.numpy as jnp
from jax.experimental import pallas as pl
from jax.experimental.pallas import tpu as pltpu

_MIB = 1024 * 1024
_ROW_ALIGN = 16  # sublane-safe row-tile multiple for both f32 (8) and bf16 (16)


def _round_up(x, m):
    return ((x + m - 1) // m) * m


@functools.lru_cache(maxsize=1)
def _vmem_capacity_bytes():
    """Per-core VMEM capacity (generation aware); conservative fallback = 64 MiB (v7x)."""
    try:
        cap = int(pltpu.get_tpu_info().vmem_capacity_bytes)
        if cap > 0:
            return cap
    except Exception:
        pass
    return 64 * _MIB


# ----------------------------------------------------------------------------
# Kernels
# ----------------------------------------------------------------------------
def _ffn_kernel_resident(x_ref, w1_ref, b1_ref, w2_ref, b2_ref, o_ref):
    """Full hidden dim resident in VMEM: one fused pass per row tile."""
    cdt = w1_ref.dtype
    h = jnp.dot(x_ref[...].astype(cdt), w1_ref[...],
                preferred_element_type=jnp.float32)
    h = jnp.maximum(h + b1_ref[...], 0.0)
    y = jnp.dot(h.astype(cdt), w2_ref[...], preferred_element_type=jnp.float32)
    o_ref[...] = (y + b2_ref[...]).astype(o_ref.dtype)


def _ffn_kernel_chunked_inplace(x_ref, w1_ref, b1_ref, w2_ref, b2_ref, o_ref):
    """Hidden dim streamed in chunks; the f32 output block doubles as accumulator."""
    j = pl.program_id(1)
    cdt = w1_ref.dtype
    h = jnp.dot(x_ref[...].astype(cdt), w1_ref[...],
                preferred_element_type=jnp.float32)
    h = jnp.maximum(h + b1_ref[...], 0.0)
    y = jnp.dot(h.astype(cdt), w2_ref[...], preferred_element_type=jnp.float32)

    @pl.when(j == 0)
    def _first():
        o_ref[...] = y + b2_ref[...]

    @pl.when(j > 0)
    def _rest():
        o_ref[...] += y


def _ffn_kernel_chunked_scratch(x_ref, w1_ref, b1_ref, w2_ref, b2_ref, o_ref,
                                acc_ref):
    """Hidden dim streamed in chunks; non-f32 output -> separate f32 accumulator."""
    j = pl.program_id(1)
    cdt = w1_ref.dtype

    @pl.when(j == 0)
    def _init():
        acc_ref[...] = jnp.zeros_like(acc_ref)

    h = jnp.dot(x_ref[...].astype(cdt), w1_ref[...],
                preferred_element_type=jnp.float32)
    h = jnp.maximum(h + b1_ref[...], 0.0)
    acc_ref[...] += jnp.dot(h.astype(cdt), w2_ref[...],
                            preferred_element_type=jnp.float32)

    @pl.when(j == pl.num_programs(1) - 1)
    def _fin():
        o_ref[...] = (acc_ref[...] + b2_ref[...]).astype(o_ref.dtype)


# ----------------------------------------------------------------------------
# Tile planning (generation aware)
# ----------------------------------------------------------------------------
def _plan_tiles(M, n_embd, hidden, x_bytes, w_bytes, out_bytes, budget,
                scratch_acc_if_chunked):
    """Return (tm, th, weight_buffers, vmem_estimate_bytes)."""

    def est(tm, th, weight_bufs=2):
        b = (2 * tm * n_embd * x_bytes               # x row tiles (double-buffered)
             + weight_bufs * n_embd * th * w_bytes   # W1 chunk buffers
             + weight_bufs * th * n_embd * w_bytes   # W2 chunk buffers
             + 2 * th * 4 + 2 * n_embd * 4           # f32 biases
             + 2 * tm * n_embd * out_bytes           # out row tiles
             + tm * th * 4)                          # live f32 hidden chunk
        if th < hidden and scratch_acc_if_chunked:
            b += tm * n_embd * 4                     # f32 accumulator scratch
        return b

    # Path 1: W1/W2 fully resident in VMEM. Their block index never changes across
    # the grid, so Pallas fetches them from HBM exactly once for the whole call.
    tm = min(512, _round_up(M, _ROW_ALIGN))
    while tm > _ROW_ALIGN and est(tm, hidden) > budget:
        tm = _round_up(max(_ROW_ALIGN, tm // 2), _ROW_ALIGN)
    if est(tm, hidden) <= budget:
        # Extra row tiles are ~free with resident weights; keep >=2 so both v7x
        # TensorCores get work on the "parallel" axis.
        if M >= 2 * _ROW_ALIGN and pl.cdiv(M, tm) < 2:
            tm = _round_up((M + 1) // 2, _ROW_ALIGN)
        return tm, hidden, 2, est(tm, hidden)

    # Path 2: stream hidden chunks of W1/W2.  Weight bytes dominate HBM traffic, so
    # raise the row tile for arithmetic intensity (~tm FLOP/byte): ~768 on the
    # 128 MiB generations (v5e/v6e), ~512 on v7x's 64 MiB. Auto-shrink to fit.
    tm = min(768 if budget > 80 * _MIB else 512, _round_up(M, _ROW_ALIGN))
    th_candidates = [c for c in (2048, 1024, 512, 256, 128) if hidden % c == 0]
    if not th_candidates:
        th_candidates = [hidden]          # cannot chunk lane-densely; best effort
    th = None
    while th is None:
        for cand in th_candidates:
            if est(tm, cand) <= budget:
                th = cand
                break
        if th is None:
            if tm <= _ROW_ALIGN:
                th = th_candidates[-1]    # give up fitting; smallest chunk
                break
            tm = _round_up(max(_ROW_ALIGN, tm // 2), _ROW_ALIGN)

    weight_bufs = 2
    if th < hidden and est(tm, th, weight_bufs=3) <= budget - 2 * _MIB:
        weight_bufs = 3                   # deeper pipelining hides weight-chunk DMA
    return tm, th, weight_bufs, est(tm, th, weight_bufs=weight_bufs)


# ----------------------------------------------------------------------------
# Host wrapper
# ----------------------------------------------------------------------------
@jax.jit
def feed_forward(x, w1, b1, w2, b2):
    """out = relu(x @ W1 + b1) @ W2 + b2.  Dropout in inference mode (identity).

    x: (B, T, n_embd); w1: (n_embd, hidden); w2: (hidden, n_embd).
    W1/W2 should already be in the compute dtype (e.g. bf16, see
    prepare_inference_params) -- this wrapper never copies or casts them.
    """
    B, T, n_embd = x.shape
    hidden = w1.shape[1]
    M = B * T
    out_dtype = x.dtype

    x2d = x.reshape(M, n_embd)                       # no pad/cast: edge tiles are masked
    b1r = b1.reshape(1, hidden).astype(jnp.float32)  # f32 epilogue biases (tiny)
    b2r = b2.reshape(1, n_embd).astype(jnp.float32)

    cap = _vmem_capacity_bytes()
    budget = cap - 10 * _MIB                         # headroom for Mosaic internals
    scratch_acc_if_chunked = jnp.dtype(out_dtype) != jnp.float32
    tm, th, weight_bufs, est_bytes = _plan_tiles(
        M, n_embd, hidden,
        jnp.dtype(x.dtype).itemsize, jnp.dtype(w1.dtype).itemsize,
        jnp.dtype(out_dtype).itemsize, budget, scratch_acc_if_chunked)
    n_row = pl.cdiv(M, tm)

    if th == hidden:
        # Weights fully VMEM-resident (constant block index -> single HBM fetch).
        grid = (n_row,)
        in_specs = [
            pl.BlockSpec((tm, n_embd), lambda i: (i, 0)),
            pl.BlockSpec((n_embd, hidden), lambda i: (0, 0)),
            pl.BlockSpec((1, hidden), lambda i: (0, 0)),
            pl.BlockSpec((hidden, n_embd), lambda i: (0, 0)),
            pl.BlockSpec((1, n_embd), lambda i: (0, 0)),
        ]
        out_specs = pl.BlockSpec((tm, n_embd), lambda i: (i, 0))
        scratch = []
        kernel = _ffn_kernel_resident
        dims = ("parallel",)
    else:
        def _weight_spec(shape, index_map):
            if weight_bufs > 2:
                try:
                    return pl.BlockSpec(shape, index_map,
                                        pipeline_mode=pl.Buffered(weight_bufs))
                except TypeError:        # BlockSpec without pipeline_mode support
                    pass
            return pl.BlockSpec(shape, index_map)

        grid = (n_row, hidden // th)
        in_specs = [
            pl.BlockSpec((tm, n_embd), lambda i, j: (i, 0)),
            _weight_spec((n_embd, th), lambda i, j: (0, j)),
            pl.BlockSpec((1, th), lambda i, j: (0, j)),
            _weight_spec((th, n_embd), lambda i, j: (j, 0)),
            pl.BlockSpec((1, n_embd), lambda i, j: (0, 0)),
        ]
        out_specs = pl.BlockSpec((tm, n_embd), lambda i, j: (i, 0))
        if scratch_acc_if_chunked:
            scratch = [pltpu.VMEM((tm, n_embd), jnp.float32)]
            kernel = _ffn_kernel_chunked_scratch
        else:
            scratch = []                 # f32 output block is the accumulator
            kernel = _ffn_kernel_chunked_inplace
        dims = ("parallel", "arbitrary")

    vmem_limit = int(min(cap - 4 * _MIB, max(int(est_bytes * 1.4), 32 * _MIB)))

    out2d = pl.pallas_call(
        kernel,
        out_shape=jax.ShapeDtypeStruct((M, n_embd), out_dtype),
        grid_spec=pltpu.PrefetchScalarGridSpec(
            num_scalar_prefetch=0,
            grid=grid,
            in_specs=in_specs,
            out_specs=out_specs,
            scratch_shapes=scratch,
        ),
        compiler_params=pltpu.CompilerParams(
            dimension_semantics=dims,
            vmem_limit_bytes=vmem_limit,
        ),
    )(x2d, w1, b1r, w2, b2r)
    return out2d.reshape(B, T, n_embd)


# ----------------------------------------------------------------------------
# Parameter helpers / reference
# ----------------------------------------------------------------------------
def init_params(key, n_embd):
    """Deterministic nn.Linear-style init (uniform +/- 1/sqrt(fan_in)), f32."""
    hidden = 4 * n_embd
    k1, k2, k3, k4 = jax.random.split(key, 4)
    lim1 = 1.0 / jnp.sqrt(n_embd)
    lim2 = 1.0 / jnp.sqrt(hidden)
    w1 = jax.random.uniform(k1, (n_embd, hidden), jnp.float32, -lim1, lim1)
    b1 = jax.random.uniform(k2, (hidden,), jnp.float32, -lim1, lim1)
    w2 = jax.random.uniform(k3, (hidden, n_embd), jnp.float32, -lim2, lim2)
    b2 = jax.random.uniform(k4, (n_embd,), jnp.float32, -lim2, lim2)
    return w1, b1, w2, b2


def prepare_inference_params(w1, b1, w2, b2, compute_dtype=jnp.bfloat16):
    """One-time weight conversion done OUTSIDE the hot path (no per-call casts)."""
    return (w1.astype(compute_dtype), b1.astype(jnp.float32),
            w2.astype(compute_dtype), b2.astype(jnp.float32))


def _ref_ffn(x, w1, b1, w2, b2):
    """Pure-JAX reference emulating the kernel numerics (operand-dtype rounding,
    f32 accumulation, f32 bias/ReLU epilogue)."""
    f32 = jnp.float32
    cdt = w1.dtype
    xc = x.astype(cdt).astype(f32)
    w1f = w1.astype(f32)
    w2f = w2.astype(f32)
    h = jnp.maximum(xc @ w1f + b1.astype(f32), 0.0)
    h = h.astype(cdt).astype(f32)
    return (h @ w2f + b2.astype(f32)).astype(x.dtype)


if __name__ == "__main__":
    key = jax.random.PRNGKey(0)
    kx, kp, kx2, kp2 = jax.random.split(key, 4)

    # Small shape consistent with the module: (B, T, n_embd), hidden = 4 * n_embd.
    B, T, n_embd = 2, 8, 32
    x = jax.random.normal(kx, (B, T, n_embd), jnp.float32)
    params = prepare_inference_params(*init_params(kp, n_embd))
    out = jax.block_until_ready(feed_forward(x, *params))
    ref = _ref_ffn(x, *params)
    assert out.shape == (B, T, n_embd)
    assert jnp.allclose(out, ref, atol=2e-2, rtol=2e-2), \
        f"max abs err {float(jnp.max(jnp.abs(out - ref)))}"

    # Second small shape exercising multiple row tiles and partial edge-block
    # masking (M = 300 tokens -> two row tiles, last one partial).
    B2, T2, n_embd2 = 3, 100, 256
    x2 = jax.random.normal(kx2, (B2, T2, n_embd2), jnp.float32)
    p2 = prepare_inference_params(*init_params(kp2, n_embd2))
    out2 = jax.block_until_ready(feed_forward(x2, *p2))
    ref2 = _ref_ffn(x2, *p2)
    assert out2.shape == (B2, T2, n_embd2)
    assert jnp.allclose(out2, ref2, atol=2e-2, rtol=2e-2), \
        f"max abs err {float(jnp.max(jnp.abs(out2 - ref2)))}"

    print("KERNEL_OK")
</pallas_src>

<mosaic_0001>
module attributes {stable_mosaic.version = 11 : i64} {
  func.func @_ffn_kernel_resident(%arg0: i32, %arg1: memref<16x32xf32, #tpu.memory_space<vmem>>, %arg2: memref<32x128xbf16, #tpu.memory_space<vmem>>, %arg3: memref<1x128xf32, #tpu.memory_space<vmem>>, %arg4: memref<128x32xbf16, #tpu.memory_space<vmem>>, %arg5: memref<1x32xf32, #tpu.memory_space<vmem>>, %arg6: memref<16x32xf32, #tpu.memory_space<vmem>>) attributes {dimension_semantics = [#tpu.dimension_semantics<parallel>], iteration_bounds = array<i64: 1>, scalar_prefetch = 0 : i64, scratch_operands = 0 : i64, tpu.core_type = #tpu.core_type<tc>, window_params = [{transform_indices = @transform_0, window_bounds = array<i64: 16, 32>}, {pipeline_mode = #tpu.pipeline_mode<synchronous>, transform_indices = @transform_1, window_bounds = array<i64: 32, 128>}, {pipeline_mode = #tpu.pipeline_mode<synchronous>, transform_indices = @transform_2, window_bounds = array<i64: 1, 128>}, {pipeline_mode = #tpu.pipeline_mode<synchronous>, transform_indices = @transform_3, window_bounds = array<i64: 128, 32>}, {pipeline_mode = #tpu.pipeline_mode<synchronous>, transform_indices = @transform_4, window_bounds = array<i64: 1, 32>}, {transform_indices = @transform_5, window_bounds = array<i64: 16, 32>}]} {
    %c0 = arith.constant 0 : index
    %c0_0 = arith.constant 0 : index
    %0 = vector.load %arg1[%c0, %c0_0] : memref<16x32xf32, #tpu.memory_space<vmem>>, vector<16x32xf32>
    %1 = arith.truncf %0 : vector<16x32xf32> to vector<16x32xbf16>
    %c0_1 = arith.constant 0 : index
    %c0_2 = arith.constant 0 : index
    %2 = vector.load %arg2[%c0_1, %c0_2] : memref<32x128xbf16, #tpu.memory_space<vmem>>, vector<32x128xbf16>
    %cst = arith.constant dense<0.000000e+00> : vector<16x128xf32>
    %3 = tpu.matmul %1, %2, %cst {dimension_numbers = #tpu.dot_dimension_numbers<[1], [0], [0], [1], [0, 0, 1, 1], [], []>} : vector<16x32xbf16>, vector<32x128xbf16>, vector<16x128xf32> -> vector<16x128xf32>
    %c0_3 = arith.constant 0 : index
    %c0_4 = arith.constant 0 : index
    %4 = vector.load %arg3[%c0_3, %c0_4] : memref<1x128xf32, #tpu.memory_space<vmem>>, vector<1x128xf32>
    %5 = vector.broadcast %4 : vector<1x128xf32> to vector<16x128xf32>
    %6 = arith.addf %3, %5 : vector<16x128xf32>
    %cst_5 = arith.constant 0.000000e+00 : f32
    %7 = vector.broadcast %cst_5 : f32 to vector<16x128xf32>
    %8 = arith.maximumf %6, %7 : vector<16x128xf32>
    %9 = arith.truncf %8 : vector<16x128xf32> to vector<16x128xbf16>
    %c0_6 = arith.constant 0 : index
    %c0_7 = arith.constant 0 : index
    %10 = vector.load %arg4[%c0_6, %c0_7] : memref<128x32xbf16, #tpu.memory_space<vmem>>, vector<128x32xbf16>
    %cst_8 = arith.constant dense<0.000000e+00> : vector<16x32xf32>
    %11 = tpu.matmul %9, %10, %cst_8 {dimension_numbers = #tpu.dot_dimension_numbers<[1], [0], [0], [1], [0, 0, 1, 1], [], []>} : vector<16x128xbf16>, vector<128x32xbf16>, vector<16x32xf32> -> vector<16x32xf32>
    %c0_9 = arith.constant 0 : index
    %c0_10 = arith.constant 0 : index
    %12 = vector.load %arg5[%c0_9, %c0_10] : memref<1x32xf32, #tpu.memory_space<vmem>>, vector<1x32xf32>
    %13 = vector.broadcast %12 : vector<1x32xf32> to vector<16x32xf32>
    %14 = arith.addf %11, %13 : vector<16x32xf32>
    %c0_11 = arith.constant 0 : index
    %c0_12 = arith.constant 0 : index
    %15 = vector.load %arg6[%c0_11, %c0_12] : memref<16x32xf32, #tpu.memory_space<vmem>>, vector<16x32xf32>
    tpu.vector_store %arg6[%c0_11, %c0_12], %14 {strides = array<i32>} : memref<16x32xf32, #tpu.memory_space<vmem>>, vector<16x32xf32>,
    return
  }
  func.func @transform_0(%arg0: i32) -> (i32, i32) {
    %c0_i32 = arith.constant 0 : i32
    %c0_i32_0 = arith.constant 0 : i32
    return %arg0, %c0_i32 : i32, i32
  }
  func.func @transform_1(%arg0: i32) -> (i32, i32) {
    %c0_i32 = arith.constant 0 : i32
    %c0_i32_0 = arith.constant 0 : i32
    %c0_i32_1 = arith.constant 0 : i32
    return %c0_i32, %c0_i32_0 : i32, i32
  }
  func.func @transform_2(%arg0: i32) -> (i32, i32) {
    %c0_i32 = arith.constant 0 : i32
    %c0_i32_0 = arith.constant 0 : i32
    %c0_i32_1 = arith.constant 0 : i32
    return %c0_i32, %c0_i32_0 : i32, i32
  }
  func.func @transform_3(%arg0: i32) -> (i32, i32) {
    %c0_i32 = arith.constant 0 : i32
    %c0_i32_0 = arith.constant 0 : i32
    %c0_i32_1 = arith.constant 0 : i32
    return %c0_i32, %c0_i32_0 : i32, i32
  }
  func.func @transform_4(%arg0: i32) -> (i32, i32) {
    %c0_i32 = arith.constant 0 : i32
    %c0_i32_0 = arith.constant 0 : i32
    %c0_i32_1 = arith.constant 0 : i32
    return %c0_i32, %c0_i32_0 : i32, i32
  }
  func.func @transform_5(%arg0: i32) -> (i32, i32) {
    %c0_i32 = arith.constant 0 : i32
    %c0_i32_0 = arith.constant 0 : i32
    return %arg0, %c0_i32 : i32, i32
  }
}

</mosaic_0001>

<llo_original>
// kernel: feed_forward.1
$region0: #{feed_forward.1}
  #allocation0 [shape = 'u32[]', space=smem, size = 0x4, offset = 0x4, fixed_abs, tag = 'smem constant byte address 0x4 - core index']
  #allocation1 [shape = 'u32[72,128]{1,0:T(1,128)}', space=vmem, size = 0x9000, scoped, tag = 'internal scratch']
  %s0 = inlined_call_operand.vmem [shape: f32[16,32], index: 0, kind: input, shape index: {}]
  %s1 = inlined_call_operand.vmem [shape: bf16[32,128], index: 1, kind: input, shape index: {}]
  %s2 = inlined_call_operand.vmem [shape: f32[1,128], index: 2, kind: input, shape index: {}]
  %s3 = inlined_call_operand.vmem [shape: bf16[128,32], index: 3, kind: input, shape index: {}]
  %s4 = inlined_call_operand.vmem [shape: f32[1,32], index: 4, kind: input, shape index: {}]
  %s5 = inlined_call_operand.hbm [shape: f32[16,32], index: 5, kind: output, shape index: {}]
  %s6 = sld [smem:[#allocation0]]
  $region30: #{feed_forward.1} parent=0
    _
  %s8 = ssub.s32 1, %s6
  %s9 = scalar_select 0, %s8, %s6
  $region1: #{feed_forward.1} parent=0
    #allocation2 [shape = 'u8[8192]{0}', space=vmem, size = 0x2000, scoped, tag = 'output window, operand 0, single buffered']
    #allocation3 [shape = 's32[1]{0}', space=sflag, size = 0x4, scoped, tag = 'scoped memory for feed_forward.1']
    %10 = vsyncpa [#allocation3], 0
    // Predicated region
    $region2: #{feed_forward.1} parent=1 // pred_check
      _
    $region3: #{feed_forward.1} parent=1 // pred_check_branch
      %12 = sbr.rel (0) target = $region5
    $region4: #{feed_forward.1} parent=1 // pred_region
      _
    $region5: #{feed_forward.1} parent=1 // pred_fallthru
      _
    // Predicated region
    $region6: #{feed_forward.1} parent=1 // pred_check
      _
    $region7: #{feed_forward.1} parent=1 // pred_check_branch
      %14 = sbr.rel (0) target = $region9
    $region8: #{feed_forward.1} parent=1 // pred_region
      _
    $region9: #{feed_forward.1} parent=1 // pred_fallthru
      _
    // Predicated region
    $region10: #{feed_forward.1} parent=1 // pred_check
      _
    $region11: #{feed_forward.1} parent=1 // pred_check_branch
      %16 = sbr.rel (0) target = $region13
    $region12: #{feed_forward.1} parent=1 // pred_region
      _
    $region13: #{feed_forward.1} parent=1 // pred_fallthru
      _
    // Predicated region
    $region14: #{feed_forward.1} parent=1 // pred_check
      _
    $region15: #{feed_forward.1} parent=1 // pred_check_branch
      %18 = sbr.rel (0) target = $region17
    $region16: #{feed_forward.1} parent=1 // pred_region
      _
    $region17: #{feed_forward.1} parent=1 // pred_fallthru
      _
    // Predicated region
    $region18: #{feed_forward.1} parent=1 // pred_check
      _
    $region19: #{feed_forward.1} parent=1 // pred_check_branch
      %20 = sbr.rel (0) target = $region21
    $region20: #{feed_forward.1} parent=1 // pred_region
      _
    $region21: #{feed_forward.1} parent=1 // pred_fallthru
      _
    %v22 = vld [vmem:[%s0] sm:$0xff]
    %v23 = vld [vmem:[%s0 + $0x8] sm:$0xff]
    %v24 = vpack.c.bf16 %v23, %v22
    %v25 = vld [vmem:[%s1] sm:$0xf]
    %v26 = vld [vmem:[%s1 + $0x4] sm:$0xf]
    %v27 = vld [vmem:[%s1 + $0x8] sm:$0xf]
    %v28 = vld [vmem:[%s1 + $0xc] sm:$0xf]
    %v29 = vld [vmem:[%s2] sm:$0x1]
    %v31 = vperm.slane %v29, 0
    %v37 = vunpack.c.l.b16 %v25
    %v38 = vunpack.c.l.b16 %v26
    %v39 = vunpack.c.l.b16 %v27
    %v40 = vunpack.c.l.b16 %v28
    %v41 = vpack.c.b16 %v38, %v37
    %v42 = vpack.c.b16 %v40, %v39
    %vm45 = vcmask 261120
    %v47 = vsel %vm45, %v24, 0
    %49 = vmatpush.bf16.msra.mxu0 0
    %50 = vmatpush.bf16.msra.mxu0 0
    %51 = vmatpush.bf16.msra.mxu0 0
    %52 = vmatpush.bf16.msra.mxu0 0
    %53 = vmatpush.bf16.msra.mxu0 0
    %54 = vmatpush.bf16.msra.mxu0 0
    %55 = vmatpush.bf16.msra.mxu0 %v42
    %56 = vmatpush.bf16.msra.mxu0 %v41
    %57 = vmatmul.bf16.gmra.mxu0 %v47
    %v58 = vpop.f32.mrf.mxu0
    %v59 = vadd.f32 %v31, %v58
    %v60 = vpop.f32.mrf.mxu0
    %v61 = vadd.f32 %v31, %v60
    %62 = vdwg.mxu0
    %v63 = vmax.f32 %v59, 0.0
    %v64 = vmax.f32 %v61, 0.0
    %v65 = vpack.c.bf16 %v64, %v63
    %v66 = vld [vmem:[%s3] sm:$0xf]
    %v67 = vld [vmem:[%s3 + $0x4] sm:$0xf]
    %v68 = vld [vmem:[%s3 + $0x8] sm:$0xf]
    %v69 = vld [vmem:[%s3 + $0xc] sm:$0xf]
    %v70 = vld [vmem:[%s3 + $0x10] sm:$0xf]
    %v71 = vld [vmem:[%s3 + $0x14] sm:$0xf]
    %v72 = vld [vmem:[%s3 + $0x18] sm:$0xf]
    %v73 = vld [vmem:[%s3 + $0x1c] sm:$0xf]
    %v74 = vld [vmem:[%s3 + $0x20] sm:$0xf]
    %v75 = vld [vmem:[%s3 + $0x24] sm:$0xf]
    %v76 = vld [vmem:[%s3 + $0x28] sm:$0xf]
    %v77 = vld [vmem:[%s3 + $0x2c] sm:$0xf]
    %v78 = vld [vmem:[%s3 + $0x30] sm:$0xf]
    %v79 = vld [vmem:[%s3 + $0x34] sm:$0xf]
    %v80 = vld [vmem:[%s3 + $0x38] sm:$0xf]
    %v81 = vld [vmem:[%s3 + $0x3c] sm:$0xf]
    %v82 = vld [vmem:[%s4] sm:$0x1]
    %v84 = vperm.slane %v82, 0
    %v102 = vunpack.c.l.b16 %v66
    %v103 = vunpack.c.l.b16 %v67
    %v104 = vunpack.c.l.b16 %v68
    %v105 = vunpack.c.l.b16 %v69
    %v106 = vunpack.c.l.b16 %v70
    %v107 = vunpack.c.l.b16 %v71
    %v108 = vunpack.c.l.b16 %v72
    %v109 = vunpack.c.l.b16 %v73
    %v110 = vunpack.c.l.b16 %v74
    %v111 = vunpack.c.l.b16 %v75
    %v112 = vunpack.c.l.b16 %v76
    %v113 = vunpack.c.l.b16 %v77
    %v114 = vunpack.c.l.b16 %v78
    %v115 = vunpack.c.l.b16 %v79
    %v116 = vunpack.c.l.b16 %v80
    %v117 = vunpack.c.l.b16 %v81
    %v118 = vpack.c.b16 %v103, %v102
    %v119 = vpack.c.b16 %v105, %v104
    %v120 = vpack.c.b16 %v107, %v106
    %v121 = vpack.c.b16 %v109, %v108
    %v122 = vpack.c.b16 %v111, %v110
    %v123 = vpack.c.b16 %v113, %v112
    %v124 = vpack.c.b16 %v115, %v114
    %v125 = vpack.c.b16 %v117, %v116
    %134 = vmatpush.bf16.msra.mxu0 %v125
    %135 = vmatpush.bf16.msra.mxu0 %v124
    %136 = vmatpush.bf16.msra.mxu0 %v123
    %137 = vmatpush.bf16.msra.mxu0 %v122
    %138 = vmatpush.bf16.msra.mxu0 %v121
    %139 = vmatpush.bf16.msra.mxu0 %v120
    %140 = vmatpush.bf16.msra.mxu0 %v119
    %141 = vmatpush.bf16.msra.mxu0 %v118
    %142 = vmatmul.bf16.gmra.mxu0 %v65
    %v143 = vpop.f32.mrf.mxu0
    %v144 = vadd.f32 %v84, %v143
    %v145 = vpop.f32.mrf.mxu0
    %v146 = vadd.f32 %v84, %v145
    %147 = vdwg.mxu0
    %148 = vst.msk [vmem:[#allocation2] sm:$0xff] %vm45, %v144
    %149 = vst.msk [vmem:[#allocation2 + $0x8] sm:$0xff] %vm45, %v146
    // Predicated region
    $region22: #{feed_forward.1} parent=1 // pred_check
      _
    $region23: #{feed_forward.1} parent=1 // pred_check_branch
      %151 = sbr.rel (0) target = $region25
    $region24: #{feed_forward.1} parent=1 // pred_region
      %153 = vsyncadd [#allocation3], 0
      %s154 = sshll.u32 [#allocation2], 4
      %s155 = int_to_ptr.vmem [resolvable:$true] %s154
      %s156 = sshll.u32 %s5, 4
      %s157 = int_to_ptr.hbm [resolvable:$true] %s156
      %162 = dma.vmem_to_hbm [thread:$0]  %s155, 256, %s157, [#allocation3], 128, 128, 8
    $region25: #{feed_forward.1} parent=1 // pred_fallthru
      _
    // Predicated region
    $region26: #{feed_forward.1} parent=1 // pred_check
      _
    $region27: #{feed_forward.1} parent=1 // pred_check_branch
      %164 = sbr.rel (0) target = $region29
    $region28: #{feed_forward.1} parent=1 // pred_region
      %166 = dma.done [#allocation3], 256
    $region29: #{feed_forward.1} parent=1 // pred_fallthru
      _
    %167 = vsyncpa [#allocation3], 1

</llo_original>
